<compile_context>
chip_gen: v5e
topology: v5e:2x2
jax: 0.10.0
libtpu: 0.0.40
codegen_flags: <defaults>
</compile_context>

<pallas_src>
import jax
import jax.numpy as jnp
from jax.experimental import pallas as pl
from jax.experimental.pallas import tpu as pltpu


def _pick_tile_l(L, dilation, max_tile=512):
    """Largest multiple-of-128 divisor of L that is <= max_tile and > dilation;
    fall back to a single whole-sequence tile otherwise."""
    for cand in range(max_tile, 0, -128):
        if L % cand == 0 and cand > dilation:
            return cand
    return L


def dilated_conv1d(x, weight, dilation):
    """'same' dilated 1-D conv, PyTorch Conv1d semantics (no bias).

    x:      (B, C, L)  float32  (NCL layout)
    weight: (C, C, 3)  float32  (C_out, C_in, K), PyTorch layout
    """
    B, C, L = x.shape
    K = weight.shape[-1]
    assert K == 3
    d = int(dilation)
    assert 1 <= d < L

    TILE_L = _pick_tile_l(L, d)
    nT = L // TILE_L
    assert nT * TILE_L == L and d < TILE_L

    # --- bf16 MXU inputs (cast once, wrapper-side) -------------------------
    x_bf = x.astype(jnp.bfloat16)
    # Fused-tap weight: W_fused[o, k*C + i] = weight[o, i, k]  ->  (C, 3C)
    w_fused = jnp.transpose(weight, (0, 2, 1)).reshape(C, K * C).astype(jnp.bfloat16)

    # --- tiny per-tile halo tensors (B, nT, C, d) ---------------------------
    # lh[b, j] = x[b, :, j*TILE_L-d : j*TILE_L]        (zeros for j == 0)
    # rh[b, j] = x[b, :, (j+1)*TILE_L : (j+1)*TILE_L+d] (zeros for j == nT-1)
    # This is the only "padding" ever materialized; no padded copy of x.
    xt = x_bf.reshape(B, C, nT, TILE_L)
    zpad = jnp.zeros((B, C, 1, d), x_bf.dtype)
    lh = jnp.concatenate([zpad, xt[:, :, : nT - 1, TILE_L - d:]], axis=2)
    rh = jnp.concatenate([xt[:, :, 1:, :d], zpad], axis=2)
    lh = jnp.transpose(lh, (0, 2, 1, 3))  # (B, nT, C, d)
    rh = jnp.transpose(rh, (0, 2, 1, 3))  # (B, nT, C, d)

    def kernel(x_ref, lh_ref, rh_ref, w_ref, o_ref, stack_ref):
        # Build the (3C, TILE_L) stacked operand in VMEM scratch:
        #   rows [0:C)    : x shifted right by d  (tap 0, reads x[l-d])
        #   rows [C:2C)   : x                     (tap 1)
        #   rows [2C:3C)  : x shifted left  by d  (tap 2, reads x[l+d])
        xc = x_ref[0]                                       # (C, TILE_L) bf16
        stack_ref[0:C, 0:d] = lh_ref[0, 0]
        stack_ref[0:C, d:TILE_L] = xc[:, 0:TILE_L - d]
        stack_ref[C:2 * C, :] = xc
        stack_ref[2 * C:3 * C, 0:TILE_L - d] = xc[:, d:TILE_L]
        stack_ref[2 * C:3 * C, TILE_L - d:TILE_L] = rh_ref[0, 0]
        # Single fused (C, 3C) @ (3C, TILE_L) MXU matmul, f32 accumulation,
        # written directly to the output block (no value-chain accumulator).
        o_ref[0] = jnp.dot(
            w_ref[...], stack_ref[...], preferred_element_type=jnp.float32
        ).astype(o_ref.dtype)

    return pl.pallas_call(
        kernel,
        out_shape=jax.ShapeDtypeStruct((B, C, L), x.dtype),
        grid_spec=pltpu.PrefetchScalarGridSpec(
            num_scalar_prefetch=0,
            grid=(B, nT),
            in_specs=[
                pl.BlockSpec((1, C, TILE_L), lambda b, j: (b, 0, j)),   # x tile
                pl.BlockSpec((1, 1, C, d), lambda b, j: (b, j, 0, 0)),  # left halo
                pl.BlockSpec((1, 1, C, d), lambda b, j: (b, j, 0, 0)),  # right halo
                pl.BlockSpec((C, K * C), lambda b, j: (0, 0)),          # fused weight
            ],
            out_specs=pl.BlockSpec((1, C, TILE_L), lambda b, j: (b, 0, j)),
            scratch_shapes=[pltpu.VMEM((K * C, TILE_L), jnp.bfloat16)],
        ),
        compiler_params=pltpu.CompilerParams(
            # Both axes independent -> megacore/2-TC friendly (v7x).
            dimension_semantics=("parallel", "parallel"),
            # Stays within v7x's 64 MiB physical VMEM with headroom; >= defaults
            # on v5e/v6e so larger TILE_L still double-buffers cleanly.
            vmem_limit_bytes=48 * 1024 * 1024,
        ),
    )(x_bf, lh, rh, w_fused)


def reference_dilated_conv1d(x, weight, dilation, compute_dtype=jnp.float32):
    """Pure-JAX reference matching PyTorch Conv1d ('same', no bias).

    compute_dtype=bfloat16 mirrors the kernel's bf16 MXU inputs (f32 accum)."""
    B, C, L = x.shape
    K = weight.shape[-1]
    pad = dilation * (K - 1) // 2
    xc = x.astype(compute_dtype).astype(jnp.float32)
    wc = weight.astype(compute_dtype).astype(jnp.float32)
    xp = jnp.pad(xc, ((0, 0), (0, 0), (pad, pad)))
    out = jnp.zeros((B, C, L), jnp.float32)
    for k in range(K):
        xk = xp[:, :, k * dilation: k * dilation + L]
        out = out + jnp.einsum("oi,bil->bol", wc[:, :, k], xk)
    return out


if __name__ == "__main__":
    B, C, L = 2, 8, 128
    dilation = 2

    key = jax.random.PRNGKey(0)
    kx, kw = jax.random.split(key)
    x = jax.random.normal(kx, (B, C, L), dtype=jnp.float32)
    # PyTorch Conv1d weight shape (C_out, C_in, K), uniform(-1/sqrt(fan_in), ...)
    fan_in = C * 3
    bound = 1.0 / (fan_in ** 0.5)
    weight = jax.random.uniform(
        kw, (C, C, 3), dtype=jnp.float32, minval=-bound, maxval=bound
    )

    out = jax.block_until_ready(dilated_conv1d(x, weight, dilation))

    # Tight check against a reference with the same bf16-input / f32-accum
    # numerics, plus a loose semantic check against the full-f32 reference.
    ref_bf16 = reference_dilated_conv1d(x, weight, dilation, jnp.bfloat16)
    ref_f32 = reference_dilated_conv1d(x, weight, dilation, jnp.float32)
    err_bf16 = float(jnp.max(jnp.abs(out - ref_bf16)))
    err_f32 = float(jnp.max(jnp.abs(out - ref_f32)))
    assert err_bf16 < 1e-3, f"mismatch vs bf16-input reference: {err_bf16}"
    assert err_f32 < 1e-1, f"mismatch vs f32 reference: {err_f32}"

    print("KERNEL_OK")
</pallas_src>

<mosaic_0001>
module attributes {stable_mosaic.version = 11 : i64} {
  func.func @kernel(%arg0: i32, %arg1: i32, %arg2: memref<1x8x128xbf16, #tpu.memory_space<vmem>>, %arg3: memref<1x1x8x2xbf16, #tpu.memory_space<vmem>>, %arg4: memref<1x1x8x2xbf16, #tpu.memory_space<vmem>>, %arg5: memref<8x24xbf16, #tpu.memory_space<vmem>>, %arg6: memref<1x8x128xf32, #tpu.memory_space<vmem>>, %arg7: memref<24x128xbf16, #tpu.memory_space<vmem>>) attributes {dimension_semantics = [#tpu.dimension_semantics<parallel>, #tpu.dimension_semantics<parallel>], iteration_bounds = array<i64: 2, 1>, scalar_prefetch = 0 : i64, scratch_operands = 1 : i64, tpu.core_type = #tpu.core_type<tc>, window_params = [{transform_indices = @transform_0, window_bounds = array<i64: 1, 8, 128>}, {transform_indices = @transform_1, window_bounds = array<i64: 1, 1, 8, 2>}, {transform_indices = @transform_2, window_bounds = array<i64: 1, 1, 8, 2>}, {pipeline_mode = #tpu.pipeline_mode<synchronous>, transform_indices = @transform_3, window_bounds = array<i64: 8, 24>}, {transform_indices = @transform_4, window_bounds = array<i64: 1, 8, 128>}]} {
    %c0 = arith.constant 0 : index
    %c0_0 = arith.constant 0 : index
    %c0_1 = arith.constant 0 : index
    %0 = vector.load %arg2[%c0, %c0_0, %c0_1] : memref<1x8x128xbf16, #tpu.memory_space<vmem>>, vector<1x8x128xbf16>
    %1 = vector.shape_cast %0 : vector<1x8x128xbf16> to vector<8x128xbf16>
    %c0_2 = arith.constant 0 : index
    %c0_3 = arith.constant 0 : index
    %c0_4 = arith.constant 0 : index
    %c0_5 = arith.constant 0 : index
    %2 = vector.load %arg3[%c0_2, %c0_3, %c0_4, %c0_5] : memref<1x1x8x2xbf16, #tpu.memory_space<vmem>>, vector<1x1x8x2xbf16>
    %3 = vector.shape_cast %2 : vector<1x1x8x2xbf16> to vector<8x2xbf16>
    %c0_6 = arith.constant 0 : index
    %c0_7 = arith.constant 0 : index
    %4 = vector.load %arg7[%c0_6, %c0_7] : memref<24x128xbf16, #tpu.memory_space<vmem>>, vector<8x2xbf16>
    tpu.vector_store %arg7[%c0_6, %c0_7], %3 {strides = array<i32>} : memref<24x128xbf16, #tpu.memory_space<vmem>>, vector<8x2xbf16>,
    %5 = vector.extract_strided_slice %1 {offsets = [0, 0], sizes = [8, 126], strides = [1, 1]} : vector<8x128xbf16> to vector<8x126xbf16>
    %c0_8 = arith.constant 0 : index
    %c2 = arith.constant 2 : index
    %6 = vector.load %arg7[%c0_8, %c2] : memref<24x128xbf16, #tpu.memory_space<vmem>>, vector<8x126xbf16>
    tpu.vector_store %arg7[%c0_8, %c2], %5 {strides = array<i32>} : memref<24x128xbf16, #tpu.memory_space<vmem>>, vector<8x126xbf16>,
    %c8 = arith.constant 8 : index
    %c0_9 = arith.constant 0 : index
    %7 = vector.load %arg7[%c8, %c0_9] : memref<24x128xbf16, #tpu.memory_space<vmem>>, vector<8x128xbf16>
    tpu.vector_store %arg7[%c8, %c0_9], %1 {strides = array<i32>} : memref<24x128xbf16, #tpu.memory_space<vmem>>, vector<8x128xbf16>,
    %8 = vector.extract_strided_slice %1 {offsets = [0, 2], sizes = [8, 126], strides = [1, 1]} : vector<8x128xbf16> to vector<8x126xbf16>
    %c16 = arith.constant 16 : index
    %c0_10 = arith.constant 0 : index
    %9 = vector.load %arg7[%c16, %c0_10] : memref<24x128xbf16, #tpu.memory_space<vmem>>, vector<8x126xbf16>
    tpu.vector_store %arg7[%c16, %c0_10], %8 {strides = array<i32>} : memref<24x128xbf16, #tpu.memory_space<vmem>>, vector<8x126xbf16>,
    %c0_11 = arith.constant 0 : index
    %c0_12 = arith.constant 0 : index
    %c0_13 = arith.constant 0 : index
    %c0_14 = arith.constant 0 : index
    %10 = vector.load %arg4[%c0_11, %c0_12, %c0_13, %c0_14] : memref<1x1x8x2xbf16, #tpu.memory_space<vmem>>, vector<1x1x8x2xbf16>
    %11 = vector.shape_cast %10 : vector<1x1x8x2xbf16> to vector<8x2xbf16>
    %c16_15 = arith.constant 16 : index
    %c126 = arith.constant 126 : index
    %12 = vector.load %arg7[%c16_15, %c126] : memref<24x128xbf16, #tpu.memory_space<vmem>>, vector<8x2xbf16>
    tpu.vector_store %arg7[%c16_15, %c126], %11 {strides = array<i32>} : memref<24x128xbf16, #tpu.memory_space<vmem>>, vector<8x2xbf16>,
    %c0_16 = arith.constant 0 : index
    %c0_17 = arith.constant 0 : index
    %13 = vector.load %arg5[%c0_16, %c0_17] : memref<8x24xbf16, #tpu.memory_space<vmem>>, vector<8x24xbf16>
    %c0_18 = arith.constant 0 : index
    %c0_19 = arith.constant 0 : index
    %14 = vector.load %arg7[%c0_18, %c0_19] : memref<24x128xbf16, #tpu.memory_space<vmem>>, vector<24x128xbf16>
    %cst = arith.constant dense<0.000000e+00> : vector<8x128xf32>
    %15 = tpu.matmul %13, %14, %cst {dimension_numbers = #tpu.dot_dimension_numbers<[1], [0], [0], [1], [0, 0, 1, 1], [], []>} : vector<8x24xbf16>, vector<24x128xbf16>, vector<8x128xf32> -> vector<8x128xf32>
    %c0_20 = arith.constant 0 : index
    %c0_21 = arith.constant 0 : index
    %c0_22 = arith.constant 0 : index
    %16 = vector.load %arg6[%c0_20, %c0_21, %c0_22] : memref<1x8x128xf32, #tpu.memory_space<vmem>>, vector<1x8x128xf32>
    %17 = vector.shape_cast %16 : vector<1x8x128xf32> to vector<8x128xf32>
    %18 = vector.shape_cast %15 : vector<8x128xf32> to vector<1x8x128xf32>
    tpu.vector_store %arg6[%c0_20, %c0_21, %c0_22], %18 {strides = array<i32>} : memref<1x8x128xf32, #tpu.memory_space<vmem>>, vector<1x8x128xf32>,
    return
  }
  func.func @transform_0(%arg0: i32, %arg1: i32) -> (i32, i32, i32) {
    %c0_i32 = arith.constant 0 : i32
    %c0_i32_0 = arith.constant 0 : i32
    return %arg0, %c0_i32, %arg1 : i32, i32, i32
  }
  func.func @transform_1(%arg0: i32, %arg1: i32) -> (i32, i32, i32, i32) {
    %c0_i32 = arith.constant 0 : i32
    %c0_i32_0 = arith.constant 0 : i32
    %c0_i32_1 = arith.constant 0 : i32
    return %arg0, %arg1, %c0_i32, %c0_i32_0 : i32, i32, i32, i32
  }
  func.func @transform_2(%arg0: i32, %arg1: i32) -> (i32, i32, i32, i32) {
    %c0_i32 = arith.constant 0 : i32
    %c0_i32_0 = arith.constant 0 : i32
    %c0_i32_1 = arith.constant 0 : i32
    return %arg0, %arg1, %c0_i32, %c0_i32_0 : i32, i32, i32, i32
  }
  func.func @transform_3(%arg0: i32, %arg1: i32) -> (i32, i32) {
    %c0_i32 = arith.constant 0 : i32
    %c0_i32_0 = arith.constant 0 : i32
    %c0_i32_1 = arith.constant 0 : i32
    return %c0_i32, %c0_i32_0 : i32, i32
  }
  func.func @transform_4(%arg0: i32, %arg1: i32) -> (i32, i32, i32) {
    %c0_i32 = arith.constant 0 : i32
    %c0_i32_0 = arith.constant 0 : i32
    return %arg0, %c0_i32, %arg1 : i32, i32, i32
  }
}

</mosaic_0001>

<llo_original>
// kernel: tpu_custom_call.1
$region0: #{tpu_custom_call.1}
  #allocation0 [shape = 'u32[]', space=smem, size = 0x4, offset = 0x4, fixed_abs, tag = 'smem constant byte address 0x4 - core index']
  #allocation1 [shape = 'u32[72,128]{1,0:T(1,128)}', space=vmem, size = 0x9000, scoped, tag = 'internal scratch']
  #allocation2 [shape = 'bf16[24,128]{1,0:T(8,128)(2,1)}', space=vmem, size = 0x1800, scoped, tag = 'scratch operand']
  %s0 = inlined_call_operand.vmem [shape: bf16[2,8,128], index: 0, kind: input, shape index: {}]
  %s1 = inlined_call_operand.vmem [shape: bf16[2,1,8,2], index: 1, kind: input, shape index: {}]
  %s2 = inlined_call_operand.vmem [shape: bf16[2,1,8,2], index: 2, kind: input, shape index: {}]
  %s3 = inlined_call_operand.vmem [shape: bf16[8,24], index: 3, kind: input, shape index: {}]
  %s4 = inlined_call_operand.hbm [shape: f32[2,8,128], index: 4, kind: output, shape index: {}]
  %s5 = sld [smem:[#allocation0]]
  $region49: #{tpu_custom_call.1} parent=0
    _
  %s7 = ssub.s32 1, %s5
  %s8 = scalar_select 0, %s7, %s5
  $region1: #{tpu_custom_call.1} parent=0
    #allocation3 [shape = 'u8[8192]{0}', space=vmem, size = 0x2000, scoped, tag = 'output window, operand 0']
    #allocation4 [shape = 's32[2]{0}', space=sflag, size = 0x8, scoped, tag = 'scoped memory for tpu_custom_call.1']
    %9 = vsyncpa [#allocation4], 0
    %s10 = scalar_lea.sflag [#allocation4], 1
    %11 = vsyncpa %s10, 0
    loop: start=0, step=1, limit=4
    $region2: #{tpu_custom_call.1} parent=1 // loop_pre_header
      _
    $region3: #{tpu_custom_call.1} parent=1 // loop_header
      %s13 = sphi 0, %s17
      %p14 = scmp.ge.s32.totalorder %s13, 4
      %s20 = sphi 0, %s32
      %s21 = sphi 0, %s28
      %s22 = sphi 0, %s20
      %s23 = sphi 0, %s21
      %s24 = sphi 0, %s22
      %s25 = sphi 0, %s23
      %s37 = sphi 0, %s39
      %s40 = sphi 0, %s37
      %s41 = sphi 0, %s40
      %s57 = sphi 0, %s41
      %s65 = sphi 0, %s67
      %s68 = sphi 0, %s65
      %s69 = sphi 0, %s68
      %s85 = sphi 0, %s69
      %s93 = sphi 0, %s95
      %s96 = sphi 0, %s93
      %s97 = sphi 0, %s96
      %s113 = sphi 0, %s97
      %s117 = sphi 0, %s117
      %s119 = sphi 0, %s117
      %s120 = sphi 0, %s119
      %s134 = sphi 0, %s120
      %s142 = sphi 0, %s144
      %s145 = sphi 0, %s142
      %s146 = sphi 0, %s145
      %s162 = sphi 0, %s146
    $region4: #{tpu_custom_call.1} parent=1 // loop_header_branch
      %16 = sbr.rel (%p14) target = $region8
    $region5: #{tpu_custom_call.1} parent=1 // loop_body
      %s18 = ssub.s32 %s13, 1
      %s19 = ssub.s32 %s13, 2
      %s26 = sadd.s32 1, %s21
      %p27 = scmp.ge.s32.totalorder %s26, 1
      %s28 = scalar_select %p27, 0, %s26
      %s29 = sadd.s32 1, %s20
      %s30 = scalar_select %p27, %s29, %s20
      %p31 = scmp.ge.s32.totalorder %s30, 2
      %s32 = scalar_select %p31, 0, %s30
      %s33 = ssub.s32 %s20, %s32
      %s34 = ssub.s32 %s21, %s28
      %s35 = sor.u32 %s33, %s34
      %p36 = scmp.eq.s32.totalorder %s35, 0
      %s38 = sadd.s32 %s37, 1
      %s39 = scalar_select %p36, %s37, %s38
      %p42 = pneg %p36
      %p43 = scmp.eq.s32.totalorder %s13, 1
      %p44 = por %p42, %p43
      %p45 = scmp.ne.s32.totalorder %s37, %s40
      %p46 = scmp.eq.s32.totalorder %s13, 0
      %p47 = por %p45, %p46
      %p48 = scmp.ne.s32.totalorder %s37, %s40
      %p49 = scmp.eq.s32.totalorder %s18, 1
      %p50 = por %p48, %p49
      %p51 = scmp.ne.s32.totalorder %s40, %s41
      %p52 = scmp.eq.s32.totalorder %s18, 0
      %p53 = por %p51, %p52
      %p54 = scmp.ne.s32.totalorder %s40, %s41
      %p55 = scmp.eq.s32.totalorder %s19, 1
      %p56 = por %p54, %p55
      %p58 = scmp.ne.s32.totalorder %s41, %s57
      %p59 = scmp.eq.s32.totalorder %s19, 0
      %p60 = por %p58, %p59
      %s61 = ssub.s32 %s20, %s32
      %s62 = ssub.s32 %s21, %s28
      %s63 = sor.u32 %s61, %s62
      %p64 = scmp.eq.s32.totalorder %s63, 0
      %s66 = sadd.s32 %s65, 1
      %s67 = scalar_select %p64, %s65, %s66
      %p70 = pneg %p64
      %p71 = scmp.eq.s32.totalorder %s13, 1
      %p72 = por %p70, %p71
      %p73 = scmp.ne.s32.totalorder %s65, %s68
      %p74 = scmp.eq.s32.totalorder %s13, 0
      %p75 = por %p73, %p74
      %p76 = scmp.ne.s32.totalorder %s65, %s68
      %p77 = scmp.eq.s32.totalorder %s18, 1
      %p78 = por %p76, %p77
      %p79 = scmp.ne.s32.totalorder %s68, %s69
      %p80 = scmp.eq.s32.totalorder %s18, 0
      %p81 = por %p79, %p80
      %p82 = scmp.ne.s32.totalorder %s68, %s69
      %p83 = scmp.eq.s32.totalorder %s19, 1
      %p84 = por %p82, %p83
      %p86 = scmp.ne.s32.totalorder %s69, %s85
      %p87 = scmp.eq.s32.totalorder %s19, 0
      %p88 = por %p86, %p87
      %s89 = ssub.s32 %s20, %s32
      %s90 = ssub.s32 %s21, %s28
      %s91 = sor.u32 %s89, %s90
      %p92 = scmp.eq.s32.totalorder %s91, 0
      %s94 = sadd.s32 %s93, 1
      %s95 = scalar_select %p92, %s93, %s94
      %p98 = pneg %p92
      %p99 = scmp.eq.s32.totalorder %s13, 1
      %p100 = por %p98, %p99
      %p101 = scmp.ne.s32.totalorder %s93, %s96
      %p102 = scmp.eq.s32.totalorder %s13, 0
      %p103 = por %p101, %p102
      %p104 = scmp.ne.s32.totalorder %s93, %s96
      %p105 = scmp.eq.s32.totalorder %s18, 1
      %p106 = por %p104, %p105
      %p107 = scmp.ne.s32.totalorder %s96, %s97
      %p108 = scmp.eq.s32.totalorder %s18, 0
      %p109 = por %p107, %p108
      %p110 = scmp.ne.s32.totalorder %s96, %s97
      %p111 = scmp.eq.s32.totalorder %s19, 1
      %p112 = por %p110, %p111
      %p114 = scmp.ne.s32.totalorder %s97, %s113
      %p115 = scmp.eq.s32.totalorder %s19, 0
      %p116 = por %p114, %p115
      %s118 = sadd.s32 %s117, 1
      %p121 = scmp.eq.s32.totalorder %s13, 1
      %p122 = scmp.ne.s32.totalorder %s117, %s119
      %p123 = scmp.eq.s32.totalorder %s13, 0
      %p124 = por %p122, %p123
      %p125 = scmp.ne.s32.totalorder %s117, %s119
      %p126 = scmp.eq.s32.totalorder %s18, 1
      %p127 = por %p125, %p126
      %p128 = scmp.ne.s32.totalorder %s119, %s120
      %p129 = scmp.eq.s32.totalorder %s18, 0
      %p130 = por %p128, %p129
      %p131 = scmp.ne.s32.totalorder %s119, %s120
      %p132 = scmp.eq.s32.totalorder %s19, 1
      %p133 = por %p131, %p132
      %p135 = scmp.ne.s32.totalorder %s120, %s134
      %p136 = scmp.eq.s32.totalorder %s19, 0
      %p137 = por %p135, %p136
      %s138 = ssub.s32 %s20, %s32
      %s139 = ssub.s32 %s21, %s28
      %s140 = sor.u32 %s138, %s139
      %p141 = scmp.eq.s32.totalorder %s140, 0
      %s143 = sadd.s32 %s142, 1
      %s144 = scalar_select %p141, %s142, %s143
      %p147 = pneg %p141
      %p148 = scmp.eq.s32.totalorder %s13, 1
      %p149 = por %p147, %p148
      %p150 = scmp.ne.s32.totalorder %s142, %s145
      %p151 = scmp.eq.s32.totalorder %s13, 0
      %p152 = por %p150, %p151
      %p153 = scmp.ne.s32.totalorder %s142, %s145
      %p154 = scmp.eq.s32.totalorder %s18, 1
      %p155 = por %p153, %p154
      %p156 = scmp.ne.s32.totalorder %s145, %s146
      %p157 = scmp.eq.s32.totalorder %s18, 0
      %p158 = por %p156, %p157
      %p159 = scmp.ne.s32.totalorder %s145, %s146
      %p160 = scmp.eq.s32.totalorder %s19, 1
      %p161 = por %p159, %p160
      %p163 = scmp.ne.s32.totalorder %s146, %s162
      %p164 = scmp.eq.s32.totalorder %s19, 0
      %p165 = por %p163, %p164
      %p166 = scmp.le.s32.totalorder 1, %s13
      %p167 = scmp.lt.s32.totalorder %s13, 3
      %p168 = pnand %p166, %p167
      %p169 = pneg %p168
      // Predicated region
      $region9: #{tpu_custom_call.1} parent=5 // pred_check
        _
      $region10: #{tpu_custom_call.1} parent=5 // pred_check_branch
        %171 = sbr.rel (%p168) target = $region12
      $region11: #{tpu_custom_call.1} parent=5 // pred_region
        %s172 = ssub.s32 %s13, 1
        // Predicated region
        $region13: #{tpu_custom_call.1} parent=11 // pred_check
          %p173 = pneg %p130
        $region14: #{tpu_custom_call.1} parent=11 // pred_check_branch
          %175 = sbr.rel (%p173) target = $region16
        $region15: #{tpu_custom_call.1} parent=11 // pred_region
          _
        $region16: #{tpu_custom_call.1} parent=11 // pred_fallthru
          _
      $region12: #{tpu_custom_call.1} parent=5 // pred_fallthru
        _
      %p176 = scmp.lt.s32.totalorder %s13, 2
      // Predicated region
      $region17: #{tpu_custom_call.1} parent=5 // pred_check
        %p177 = pneg %p176
      $region18: #{tpu_custom_call.1} parent=5 // pred_check_branch
        %179 = sbr.rel (%p177) target = $region20
      $region19: #{tpu_custom_call.1} parent=5 // pred_region
        // Predicated region
        $region21: #{tpu_custom_call.1} parent=19 // pred_check
          %p180 = pneg %p47
        $region22: #{tpu_custom_call.1} parent=19 // pred_check_branch
          %182 = sbr.rel (%p180) target = $region24
        $region23: #{tpu_custom_call.1} parent=19 // pred_region
          %p183 = scmp.lt.s32.totalorder %s20, 1
          %s184 = scalar_select %p183, %s20, 1
          %p185 = scmp.lt.s32.totalorder %s21, 0
          %s186 = scalar_select %p185, %s21, 0
          %s187 = sadd.s32 %s186, %s184
          %s188 = smul.addr %s187, 4
          %s189 = scalar_lea.vmem %s0, %s188
        $region24: #{tpu_custom_call.1} parent=19 // pred_fallthru
          _
        // Predicated region
        $region25: #{tpu_custom_call.1} parent=19 // pred_check
          %p190 = pneg %p75
        $region26: #{tpu_custom_call.1} parent=19 // pred_check_branch
          %192 = sbr.rel (%p190) target = $region28
        $region27: #{tpu_custom_call.1} parent=19 // pred_region
          %p193 = scmp.lt.s32.totalorder %s20, 1
          %s194 = scalar_select %p193, %s20, 1
          %p195 = scmp.lt.s32.totalorder %s21, 0
          %s196 = scalar_select %p195, %s21, 0
          %s197 = sadd.s32 %s196, %s194
          %s198 = smul.addr %s197, 4
          %s199 = scalar_lea.vmem %s1, %s198
        $region28: #{tpu_custom_call.1} parent=19 // pred_fallthru
          _
        // Predicated region
        $region29: #{tpu_custom_call.1} parent=19 // pred_check
          %p200 = pneg %p103
        $region30: #{tpu_custom_call.1} parent=19 // pred_check_branch
          %202 = sbr.rel (%p200) target = $region32
        $region31: #{tpu_custom_call.1} parent=19 // pred_region
          %p203 = scmp.lt.s32.totalorder %s20, 1
          %s204 = scalar_select %p203, %s20, 1
          %p205 = scmp.lt.s32.totalorder %s21, 0
          %s206 = scalar_select %p205, %s21, 0
          %s207 = sadd.s32 %s206, %s204
          %s208 = smul.addr %s207, 4
          %s209 = scalar_lea.vmem %s2, %s208
        $region32: #{tpu_custom_call.1} parent=19 // pred_fallthru
          _
      $region20: #{tpu_custom_call.1} parent=5 // pred_fallthru
        _
      %p210 = scmp.le.s32.totalorder 1, %s13
      %p211 = scmp.lt.s32.totalorder %s13, 3
      %p212 = pnand %p210, %p211
      %p213 = pneg %p212
      // Predicated region
      $region33: #{tpu_custom_call.1} parent=5 // pred_check
        _
      $region34: #{tpu_custom_call.1} parent=5 // pred_check_branch
        %215 = sbr.rel (%p212) target = $region36
      $region35: #{tpu_custom_call.1} parent=5 // pred_region
        %s216 = ssub.s32 %s13, 1
        %p217 = scmp.lt.s32.totalorder %s22, 1
        %s218 = scalar_select %p217, %s22, 1
        %p219 = scmp.lt.s32.totalorder %s23, 0
        %s220 = scalar_select %p219, %s23, 0
        %s221 = sadd.s32 %s220, %s218
        %s222 = smul.addr %s221, 4
        %s223 = scalar_lea.vmem %s0, %s222
        %p224 = pneg %p53
        %p225 = pneg %p50
        %p226 = scmp.lt.s32.totalorder %s22, 1
        %s227 = scalar_select %p226, %s22, 1
        %p228 = scmp.lt.s32.totalorder %s23, 0
        %s229 = scalar_select %p228, %s23, 0
        %s230 = sadd.s32 %s229, %s227
        %s231 = smul.addr %s230, 4
        %s232 = scalar_lea.vmem %s1, %s231
        %p233 = pneg %p81
        %p234 = pneg %p78
        %p235 = scmp.lt.s32.totalorder %s22, 1
        %s236 = scalar_select %p235, %s22, 1
        %p237 = scmp.lt.s32.totalorder %s23, 0
        %s238 = scalar_select %p237, %s23, 0
        %s239 = sadd.s32 %s238, %s236
        %s240 = smul.addr %s239, 4
        %s241 = scalar_lea.vmem %s2, %s240
        %p242 = pneg %p109
        %p243 = pneg %p106
        %p244 = pneg %p130
        %p245 = pneg %p127
        %p246 = pneg %p158
        %p247 = pneg %p155
        %s248 = sand.u32 %s145, 1
        %s249 = scalar_lea.sflag [#allocation4], %s248
        %s250 = sand.u32 %s145, 1
        %s251 = smul.addr %s250, 8
        %s252 = scalar_lea.vmem [#allocation3], %s251
        %p253 = scmp.lt.s32.totalorder %s22, 1
        %s254 = scalar_select %p253, %s22, 1
        %p255 = scmp.lt.s32.totalorder %s23, 0
        %s256 = scalar_select %p255, %s23, 0
        %s257 = sadd.s32 %s256, %s254
        %s258 = smul.addr %s257, 4
        %s259 = scalar_lea.vmem %s0, %s258
        %p260 = scmp.lt.s32.totalorder %s22, 1
        %s261 = scalar_select %p260, %s22, 1
        %p262 = scmp.lt.s32.totalorder %s23, 0
        %s263 = scalar_select %p262, %s23, 0
        %s264 = sadd.s32 %s263, %s261
        %s265 = smul.addr %s264, 4
        %s266 = scalar_lea.vmem %s1, %s265
        %p267 = scmp.lt.s32.totalorder %s22, 1
        %s268 = scalar_select %p267, %s22, 1
        %p269 = scmp.lt.s32.totalorder %s23, 0
        %s270 = scalar_select %p269, %s23, 0
        %s271 = sadd.s32 %s270, %s268
        %s272 = smul.addr %s271, 4
        %s273 = scalar_lea.vmem %s2, %s272
        %v275 = vld [vmem:[%s259] sm:$0xf]
        %v276 = vld [vmem:[%s266] sm:$0xf]
        %vm277 = vcmask 11264
        %278 = vst.msk [vmem:[#allocation2] sm:$0xf] %vm277, %v276
        %280 = vrot.lane.b32.xlu0 %v275, 2
        %v281 = vpop.permute.xlu0 %280
        %vm283 = vcmask 1043472
        %284 = vst.msk [vmem:[#allocation2] sm:$0xf] %vm283, %v281
        %285 = vst [vmem:[#allocation2 + $0x4] sm:$0xf] %v275
        %286 = vrot.lane.b32.xlu0 %v275, 126
        %v287 = vpop.permute.xlu0 %286
        %vm289 = vcmask 1027072
        %290 = vst.msk [vmem:[#allocation2 + $0x8] sm:$0xf] %vm289, %v287
        %v291 = vld [vmem:[%s273] sm:$0xf]
        %293 = vrot.lane.b32.xlu0 %v291, 126
        %v294 = vpop.permute.xlu0 %293
        %vm296 = vcmask 1044464
        %297 = vst.msk [vmem:[#allocation2 + $0x8] sm:$0xf] %vm296, %v294
        %v298 = vld [vmem:[%s3] sm:$0xf]
        %v299 = vld [vmem:[#allocation2] sm:$0xf]
        %v300 = vld [vmem:[#allocation2 + $0x4] sm:$0xf]
        %v301 = vld [vmem:[#allocation2 + $0x8] sm:$0xf]
        %v305 = vunpack.c.l.b16 %v299
        %v306 = vunpack.c.l.b16 %v300
        %v307 = vunpack.c.l.b16 %v301
        %v308 = vpack.c.b16 %v306, %v305
        %v309 = vpack.c.b16 %v307, %v307
        %vm311 = vcmask 195584
        %v313 = vsel %vm311, %v298, 0
        %vm315 = vcmask 1043456
        %v317 = vsel %vm315, %v309, 0
        %319 = vmatpush.bf16.msra.mxu0 0
        %320 = vmatpush.bf16.msra.mxu0 0
        %321 = vmatpush.bf16.msra.mxu0 0
        %322 = vmatpush.bf16.msra.mxu0 0
        %323 = vmatpush.bf16.msra.mxu0 0
        %324 = vmatpush.bf16.msra.mxu0 0
        %325 = vmatpush.bf16.msra.mxu0 %v317
        %326 = vmatpush.bf16.msra.mxu0 %v308
        %327 = vmatmul.bf16.gmra.mxu0 %v313
        %v328 = vpop.f32.mrf.mxu0
        %v329 = vadd.f32 0.0, %v328
        %v330 = vpop.f32.mrf.mxu0
        %331 = vdwg.mxu0
        %332 = vst [vmem:[%s252] sm:$0xff] %v329
        %s333 = sand.u32 %s145, 1
        %s334 = scalar_lea.sflag [#allocation4], %s333
        %s335 = sand.u32 %s145, 1
        %s336 = smul.addr %s335, 8
        %s337 = scalar_lea.vmem [#allocation3], %s336
        // Predicated region
        $region37: #{tpu_custom_call.1} parent=35 // pred_check
          %p338 = pneg %p155
        $region38: #{tpu_custom_call.1} parent=35 // pred_check_branch
          %340 = sbr.rel (%p338) target = $region40
        $region39: #{tpu_custom_call.1} parent=35 // pred_region
          %342 = vsyncadd %s334, 0
          %s343 = sadd.s32 %s23, %s22
          %s344 = smul.addr %s343, 8
          %s345 = scalar_lea.hbm %s4, %s344
          %s347 = sshll.u32 %s337, 4
          %s348 = int_to_ptr.vmem [resolvable:$true] %s347
          %s349 = sshll.u32 %s345, 4
          %s350 = int_to_ptr.hbm [resolvable:$true] %s349
          %352 = dma.vmem_to_hbm [thread:$0]  %s348, 128, %s350, %s334
        $region40: #{tpu_custom_call.1} parent=35 // pred_fallthru
          _
      $region36: #{tpu_custom_call.1} parent=5 // pred_fallthru
        _
      %p353 = scmp.le.s32.totalorder 2, %s13
      // Predicated region
      $region41: #{tpu_custom_call.1} parent=5 // pred_check
        %p354 = pneg %p353
      $region42: #{tpu_custom_call.1} parent=5 // pred_check_branch
        %356 = sbr.rel (%p354) target = $region44
      $region43: #{tpu_custom_call.1} parent=5 // pred_region
        %s357 = ssub.s32 %s13, 2
        // Predicated region
        $region45: #{tpu_custom_call.1} parent=43 // pred_check
          %p358 = pneg %p161
        $region46: #{tpu_custom_call.1} parent=43 // pred_check_branch
          %360 = sbr.rel (%p358) target = $region48
        $region47: #{tpu_custom_call.1} parent=43 // pred_region
          %s361 = sand.u32 %s146, 1
          %s362 = scalar_lea.sflag [#allocation4], %s361
          %s363 = sand.u32 %s146, 1
          %s364 = smul.addr %s363, 8
          %s365 = scalar_lea.vmem [#allocation3], %s364
          %367 = dma.done %s362, 128
        $region48: #{tpu_custom_call.1} parent=43 // pred_fallthru
          _
      $region44: #{tpu_custom_call.1} parent=5 // pred_fallthru
        _
    $region6: #{tpu_custom_call.1} parent=1 // loop_footer
      %s17 = sadd.s32 1, %s13
    $region7: #{tpu_custom_call.1} parent=1 // loop_footer_branch
      %12 = sbr.rel target = $region3
    $region8: #{tpu_custom_call.1} parent=1 // loop_exit
      _
    %368 = vsyncpa [#allocation4], 1
    %s369 = scalar_lea.sflag [#allocation4], 1
    %370 = vsyncpa %s369, 1

</llo_original>
